<compile_context>
chip_gen: v7x
topology: tpu7x:2x2x1
jax: 0.10.0
libtpu: 0.0.40
codegen_flags: <defaults>
</compile_context>

<pallas_src>
import jax
import jax.numpy as jnp
from jax.experimental import pallas as pl
from jax.experimental.pallas import tpu as pltpu

LOG_STD_MAX = 2.0
LOG_STD_MIN = -5.0

_VMEM = pl.BlockSpec(memory_space=pltpu.MemorySpace.VMEM)
_SMEM = pl.BlockSpec(memory_space=pltpu.MemorySpace.SMEM)
_HP = jax.lax.Precision.HIGHEST   # only used in the one-time offline fold / reference


# ---------------------------------------------------------------------------
# Fused kernel factory: 3 attention layers (rank-1 collapsed) + actor head.
# Static slab offsets are baked into the kernel via closure.
# ---------------------------------------------------------------------------
def _make_actor_kernel(layout, dims):
    N = dims["num_obs"]
    F = dims["fc_hidden"]
    A = dims["num_act"]
    L = dims["num_layers"]
    w_off = layout["w_layers"]
    bout_off = layout["bout"]
    w1_off, b1_off = layout["w1"], layout["b1"]
    w2_off, b2_off = layout["w2"], layout["b2"]
    wms_off, bms_off = layout["wms"], layout["bms"]

    def kernel(x_ref, mask_ref, coef_ref, slab_ref, out_ref):
        h = x_ref[...]                                   # (B, N)
        maskb = mask_ref[...]                            # (B, N, N)

        for l in range(L):                               # static unroll, L=3
            # Rank-1-collapsed score coefficients (scalars from SMEM).
            a_xx = coef_ref[4 * l + 0]                   # wq . wk
            a_xi = coef_ref[4 * l + 1]                   # wq . bk
            a_xj = coef_ref[4 * l + 2]                   # bq . wk
            a_cc = coef_ref[4 * l + 3]                   # bq . bk

            hi = h[:, :, None]                           # (B, N, 1)
            hj = h[:, None, :]                           # (B, 1, N)
            scores = a_xx * (hi * hj) + a_xi * hi + a_xj * hj + a_cc
            masked = scores * maskb                      # (B, N, N)

            # torch nn.Softmax(dim=1): normalize over the row (i) axis.
            m = jnp.max(masked, axis=1, keepdims=True)
            e = jnp.exp(masked - m)
            soft = e / jnp.sum(e, axis=1, keepdims=True)   # exact f32 division

            # sv[b,i,:] = s1[b,i]*wv + s0[b,i]*bv  ->  fold wv/bv into out_fc.
            s1 = jnp.sum(soft * hj, axis=2)              # (B, N) = soft @ h
            s0 = jnp.sum(soft, axis=2)                   # (B, N)

            base = w_off + l * 2 * N
            wvo = slab_ref[base:base + N, :N]            # (N, N)
            bvo = slab_ref[base + N:base + 2 * N, :N]    # (N, N)
            boutl = slab_ref[bout_off + l:bout_off + l + 1, :N]   # (1, N)

            # Exact-f32 VPU contractions (K = N = 8); independent partials.
            h = (jnp.sum(s1[:, :, None] * wvo[None, :, :], axis=1)
                 + jnp.sum(s0[:, :, None] * bvo[None, :, :], axis=1)
                 + boutl)                                # (B, N)

        # Actor head (Linear+ReLU x2, fused fc_mean|fc_logstd), VPU form.
        w1 = slab_ref[w1_off:w1_off + N, :F]             # (N, F)
        b1 = slab_ref[b1_off:b1_off + 1, :F]             # (1, F)
        h1 = jnp.maximum(jnp.sum(h[:, :, None] * w1[None, :, :], axis=1) + b1, 0.0)

        w2 = slab_ref[w2_off:w2_off + F, :F]             # (F, F)
        b2 = slab_ref[b2_off:b2_off + 1, :F]             # (1, F)
        h2 = jnp.maximum(jnp.sum(h1[:, :, None] * w2[None, :, :], axis=1) + b2, 0.0)

        wms = slab_ref[wms_off:wms_off + F, :2 * A]      # (F, 2A)
        bms = slab_ref[bms_off:bms_off + 1, :2 * A]      # (1, 2A)
        mls = jnp.sum(h2[:, :, None] * wms[None, :, :], axis=1) + bms   # (B, 2A)

        # Apply tanh/affine to the logstd lanes only; one wide store.
        col = jax.lax.broadcasted_iota(jnp.int32, mls.shape, 1)
        ls = LOG_STD_MIN + 0.5 * (LOG_STD_MAX - LOG_STD_MIN) * (jnp.tanh(mls) + 1.0)
        out_ref[...] = jnp.where(col >= A, ls, mls)

    return kernel


def actor_forward(x, mask3d, fp):
    """x: (B, N) f32; mask3d: (B, N, N) f32 (the registered att_mask buffer);
    fp: fused params from fuse_actor_params."""
    b = x.shape[0]
    num_act = fp["dims"]["num_act"]
    kernel = _make_actor_kernel(fp["layout"], fp["dims"])
    out = pl.pallas_call(
        kernel,
        out_shape=jax.ShapeDtypeStruct((b, 2 * num_act), jnp.float32),
        in_specs=[_VMEM,      # x               (B, N)
                  _VMEM,      # mask            (B, N, N)
                  _SMEM,      # coef scalars    (L*4,)
                  _VMEM],     # packed slab     (rows, 128)
        out_specs=_VMEM,      # mean|logstd     (B, 2A)
    )(x, mask3d, fp["coef"], fp["slab"])
    return out[:, :num_act], out[:, num_act:]


# ---------------------------------------------------------------------------
# One-time parameter folding + packing into a single lane-dense slab.
# ---------------------------------------------------------------------------
def fuse_actor_params(params, num_obs, num_act, fc_hidden_dim, hidden_dim):
    L = len(params["att_layers"])
    N, F, A = num_obs, fc_hidden_dim, num_act

    def _align8(r):
        return (r + 7) // 8 * 8

    layout = {}
    r = 0
    layout["w_layers"] = r; r = _align8(r + L * 2 * N)   # per layer: [wv_out; bv_out]
    layout["bout"] = r;     r = _align8(r + L)
    layout["w1"] = r;       r = _align8(r + N)
    layout["b1"] = r;       r = _align8(r + 1)
    layout["w2"] = r;       r = _align8(r + F)
    layout["b2"] = r;       r = _align8(r + 1)
    layout["wms"] = r;      r = _align8(r + F)
    layout["bms"] = r;      r = _align8(r + 1)
    total_rows = _align8(r)

    slab = jnp.zeros((total_rows, 128), jnp.float32)
    coefs = []
    for l, p in enumerate(params["att_layers"]):
        wq, bq = p["wq"][0], p["bq"][0]                  # (H,)
        wk, bk = p["wk"][0], p["bk"][0]
        wv, bv = p["wv"][0], p["bv"][0]
        coefs.extend([jnp.sum(wq * wk), jnp.sum(wq * bk),
                      jnp.sum(bq * wk), jnp.sum(bq * bk)])
        wout_r = p["wout"].reshape(N, hidden_dim, N)     # (N, H, N)
        wv_out = jnp.einsum('h,nho->no', wv, wout_r, precision=_HP)   # (N, N)
        bv_out = jnp.einsum('h,nho->no', bv, wout_r, precision=_HP)   # (N, N)
        base = layout["w_layers"] + l * 2 * N
        slab = slab.at[base:base + N, :N].set(wv_out)
        slab = slab.at[base + N:base + 2 * N, :N].set(bv_out)
        slab = slab.at[layout["bout"] + l, :N].set(p["bout"][0])

    head = params["head"]
    slab = slab.at[layout["w1"]:layout["w1"] + N, :F].set(head["w1"])
    slab = slab.at[layout["b1"], :F].set(head["b1"][0])
    slab = slab.at[layout["w2"]:layout["w2"] + F, :F].set(head["w2"])
    slab = slab.at[layout["b2"], :F].set(head["b2"][0])
    slab = slab.at[layout["wms"]:layout["wms"] + F, :A].set(head["wm"])
    slab = slab.at[layout["wms"]:layout["wms"] + F, A:2 * A].set(head["ws"])
    slab = slab.at[layout["bms"], :A].set(head["bm"][0])
    slab = slab.at[layout["bms"], A:2 * A].set(head["bs"][0])

    return dict(
        coef=jnp.stack(coefs),                           # (L*4,) SMEM scalars
        slab=slab,                                       # (rows, 128) VMEM slab
        layout=layout,
        dims=dict(num_obs=N, fc_hidden=F, num_act=A, num_layers=L),
    )


# ---------------------------------------------------------------------------
# Deterministic synthetic parameter init (shapes follow the torch __init__).
# ---------------------------------------------------------------------------
def init_actor_params(key, num_obs, num_act, hidden_dim=256,
                      fc_hidden_dim=256, num_attention_layers=3):
    keys = jax.random.split(key, num_attention_layers + 1)
    att_layers = []
    for i in range(num_attention_layers):
        k = jax.random.split(keys[i], 8)
        att_layers.append(dict(
            wq=0.1 * jax.random.normal(k[0], (1, hidden_dim), jnp.float32),
            bq=0.1 * jax.random.normal(k[1], (1, hidden_dim), jnp.float32),
            wk=0.1 * jax.random.normal(k[2], (1, hidden_dim), jnp.float32),
            bk=0.1 * jax.random.normal(k[3], (1, hidden_dim), jnp.float32),
            wv=0.1 * jax.random.normal(k[4], (1, hidden_dim), jnp.float32),
            bv=0.1 * jax.random.normal(k[5], (1, hidden_dim), jnp.float32),
            # out_fc: Linear(num_obs*hidden, num_obs), stored as (in, out)
            wout=jax.random.normal(k[6], (num_obs * hidden_dim, num_obs),
                                   jnp.float32) / jnp.sqrt(num_obs * hidden_dim),
            bout=0.1 * jax.random.normal(k[7], (1, num_obs), jnp.float32),
        ))
    kh = jax.random.split(keys[-1], 8)
    head = dict(
        w1=jax.random.normal(kh[0], (num_obs, fc_hidden_dim), jnp.float32) / jnp.sqrt(num_obs),
        b1=0.1 * jax.random.normal(kh[1], (1, fc_hidden_dim), jnp.float32),
        w2=jax.random.normal(kh[2], (fc_hidden_dim, fc_hidden_dim), jnp.float32) / jnp.sqrt(fc_hidden_dim),
        b2=0.1 * jax.random.normal(kh[3], (1, fc_hidden_dim), jnp.float32),
        wm=jax.random.normal(kh[4], (fc_hidden_dim, num_act), jnp.float32) / jnp.sqrt(fc_hidden_dim),
        bm=0.1 * jax.random.normal(kh[5], (1, num_act), jnp.float32),
        ws=jax.random.normal(kh[6], (fc_hidden_dim, num_act), jnp.float32) / jnp.sqrt(fc_hidden_dim),
        bs=0.1 * jax.random.normal(kh[7], (1, num_act), jnp.float32),
    )
    return dict(att_layers=att_layers, head=head)


# ---------------------------------------------------------------------------
# Pure-JAX reference (mirrors the torch forward exactly, full hidden_dim math)
# — validates the algebraic collapse end to end.
# ---------------------------------------------------------------------------
def actor_forward_ref(x, mask3d, params):
    h = x
    for p in params["att_layers"]:
        xe = h[:, :, None]
        q = xe * p["wq"] + p["bq"]
        k = xe * p["wk"] + p["bk"]
        v = xe * p["wv"] + p["bv"]
        scores = jnp.einsum('bih,bjh->bij', q, k, precision=_HP)
        masked = scores * mask3d
        soft = jax.nn.softmax(masked, axis=1)
        sv = jnp.einsum('bij,bjh->bih', soft, v, precision=_HP)
        flat = sv.reshape(h.shape[0], -1)
        h = jnp.dot(flat, p["wout"], precision=_HP) + p["bout"]
    hp = params["head"]
    t = jnp.maximum(jnp.dot(h, hp["w1"], precision=_HP) + hp["b1"], 0.0)
    t = jnp.maximum(jnp.dot(t, hp["w2"], precision=_HP) + hp["b2"], 0.0)
    mean = jnp.dot(t, hp["wm"], precision=_HP) + hp["bm"]
    ls = jnp.tanh(jnp.dot(t, hp["ws"], precision=_HP) + hp["bs"])
    ls = LOG_STD_MIN + 0.5 * (LOG_STD_MAX - LOG_STD_MIN) * (ls + 1.0)
    return mean, ls


if __name__ == "__main__":
    batch, num_obs, num_act = 2, 8, 4
    hidden_dim, fc_hidden = 256, 32
    num_attention_layers = 3

    key = jax.random.PRNGKey(0)
    kx, kp = jax.random.split(key, 2)

    params = init_actor_params(kp, num_obs, num_act, hidden_dim,
                               fc_hidden, num_attention_layers)
    fused = fuse_actor_params(params, num_obs, num_act, fc_hidden, hidden_dim)

    # att_mask buffer (batch, num_obs, num_obs): Int64 in torch, used
    # multiplicatively -> float32.
    mask3d = jnp.broadcast_to(jnp.tril(jnp.ones((num_obs, num_obs), jnp.float32)),
                              (batch, num_obs, num_obs))

    x = jax.random.normal(kx, (batch, num_obs), jnp.float32)

    mean, log_std = actor_forward(x, mask3d, fused)
    mean, log_std = jax.block_until_ready((mean, log_std))

    ref_mean, ref_log_std = actor_forward_ref(x, mask3d, params)
    assert mean.shape == (batch, num_act) and log_std.shape == (batch, num_act)
    assert jnp.allclose(mean, ref_mean, rtol=1e-3, atol=1e-3)
    assert jnp.allclose(log_std, ref_log_std, rtol=1e-3, atol=1e-3)
    assert bool(jnp.all(log_std >= LOG_STD_MIN)) and bool(jnp.all(log_std <= LOG_STD_MAX))

    print("KERNEL_OK")
</pallas_src>

<mosaic_0001>
module attributes {stable_mosaic.version = 11 : i64} {
  func.func @kernel(%arg0: memref<2x8xf32, #tpu.memory_space<vmem>>, %arg1: memref<2x8x8xf32, #tpu.memory_space<vmem>>, %arg2: memref<12xf32, #tpu.memory_space<smem>>, %arg3: memref<152x128xf32, #tpu.memory_space<vmem>>, %arg4: memref<2x8xf32, #tpu.memory_space<vmem>>) attributes {dimension_semantics = [], scalar_prefetch = 0 : i64, scratch_operands = 0 : i64, tpu.core_type = #tpu.core_type<tc>} {
    %c0 = arith.constant 0 : index
    %c0_0 = arith.constant 0 : index
    %0 = vector.load %arg0[%c0, %c0_0] : memref<2x8xf32, #tpu.memory_space<vmem>>, vector<2x8xf32>
    %c0_1 = arith.constant 0 : index
    %c0_2 = arith.constant 0 : index
    %c0_3 = arith.constant 0 : index
    %1 = vector.load %arg1[%c0_1, %c0_2, %c0_3] : memref<2x8x8xf32, #tpu.memory_space<vmem>>, vector<2x8x8xf32>
    %c0_4 = arith.constant 0 : index
    %2 = memref.load %arg2[%c0_4] : memref<12xf32, #tpu.memory_space<smem>>
    %c1 = arith.constant 1 : index
    %3 = memref.load %arg2[%c1] : memref<12xf32, #tpu.memory_space<smem>>
    %c2 = arith.constant 2 : index
    %4 = memref.load %arg2[%c2] : memref<12xf32, #tpu.memory_space<smem>>
    %c3 = arith.constant 3 : index
    %5 = memref.load %arg2[%c3] : memref<12xf32, #tpu.memory_space<smem>>
    %6 = vector.shape_cast %0 : vector<2x8xf32> to vector<2x8x1xf32>
    %7 = vector.shape_cast %0 : vector<2x8xf32> to vector<2x1x8xf32>
    %8 = vector.broadcast %6 : vector<2x8x1xf32> to vector<2x8x8xf32>
    %9 = vector.broadcast %7 : vector<2x1x8xf32> to vector<2x8x8xf32>
    %10 = arith.mulf %8, %9 : vector<2x8x8xf32>
    %11 = vector.broadcast %2 : f32 to vector<2x8x8xf32>
    %12 = arith.mulf %11, %10 : vector<2x8x8xf32>
    %13 = vector.broadcast %3 : f32 to vector<2x8x1xf32>
    %14 = arith.mulf %13, %6 : vector<2x8x1xf32>
    %15 = vector.broadcast %14 : vector<2x8x1xf32> to vector<2x8x8xf32>
    %16 = arith.addf %12, %15 : vector<2x8x8xf32>
    %17 = vector.broadcast %4 : f32 to vector<2x1x8xf32>
    %18 = arith.mulf %17, %7 : vector<2x1x8xf32>
    %19 = vector.broadcast %18 : vector<2x1x8xf32> to vector<2x8x8xf32>
    %20 = arith.addf %16, %19 : vector<2x8x8xf32>
    %21 = vector.broadcast %5 : f32 to vector<2x8x8xf32>
    %22 = arith.addf %20, %21 : vector<2x8x8xf32>
    %23 = arith.mulf %22, %1 : vector<2x8x8xf32>
    %cst = arith.constant dense<0xFF800000> : vector<2x8xf32>
    %24 = vector.multi_reduction <maximumf>, %23, %cst [1] : vector<2x8x8xf32> to vector<2x8xf32>
    %25 = vector.shape_cast %24 : vector<2x8xf32> to vector<2x1x8xf32>
    %26 = vector.broadcast %25 : vector<2x1x8xf32> to vector<2x8x8xf32>
    %27 = arith.subf %23, %26 : vector<2x8x8xf32>
    %28 = math.exp %27 : vector<2x8x8xf32>
    %cst_5 = arith.constant dense<0.000000e+00> : vector<2x8xf32>
    %29 = vector.multi_reduction <add>, %28, %cst_5 [1] : vector<2x8x8xf32> to vector<2x8xf32>
    %30 = vector.shape_cast %29 : vector<2x8xf32> to vector<2x1x8xf32>
    %31 = vector.broadcast %30 : vector<2x1x8xf32> to vector<2x8x8xf32>
    %32 = arith.divf %28, %31 : vector<2x8x8xf32>
    %33 = vector.broadcast %7 : vector<2x1x8xf32> to vector<2x8x8xf32>
    %34 = arith.mulf %32, %33 : vector<2x8x8xf32>
    %cst_6 = arith.constant dense<0.000000e+00> : vector<2x8xf32>
    %35 = vector.multi_reduction <add>, %34, %cst_6 [2] : vector<2x8x8xf32> to vector<2x8xf32>
    %cst_7 = arith.constant dense<0.000000e+00> : vector<2x8xf32>
    %36 = vector.multi_reduction <add>, %32, %cst_7 [2] : vector<2x8x8xf32> to vector<2x8xf32>
    %c0_8 = arith.constant 0 : index
    %c0_9 = arith.constant 0 : index
    %37 = vector.load %arg3[%c0_8, %c0_9] : memref<152x128xf32, #tpu.memory_space<vmem>>, vector<8x8xf32>
    %c8 = arith.constant 8 : index
    %c0_10 = arith.constant 0 : index
    %38 = vector.load %arg3[%c8, %c0_10] : memref<152x128xf32, #tpu.memory_space<vmem>>, vector<8x8xf32>
    %c48 = arith.constant 48 : index
    %c0_11 = arith.constant 0 : index
    %39 = vector.load %arg3[%c48, %c0_11] : memref<152x128xf32, #tpu.memory_space<vmem>>, vector<1x8xf32>
    %40 = vector.shape_cast %35 : vector<2x8xf32> to vector<2x8x1xf32>
    %41 = vector.shape_cast %37 : vector<8x8xf32> to vector<1x8x8xf32>
    %42 = vector.broadcast %40 : vector<2x8x1xf32> to vector<2x8x8xf32>
    %43 = vector.broadcast %41 : vector<1x8x8xf32> to vector<2x8x8xf32>
    %44 = arith.mulf %42, %43 : vector<2x8x8xf32>
    %cst_12 = arith.constant dense<0.000000e+00> : vector<2x8xf32>
    %45 = vector.multi_reduction <add>, %44, %cst_12 [1] : vector<2x8x8xf32> to vector<2x8xf32>
    %46 = vector.shape_cast %36 : vector<2x8xf32> to vector<2x8x1xf32>
    %47 = vector.shape_cast %38 : vector<8x8xf32> to vector<1x8x8xf32>
    %48 = vector.broadcast %46 : vector<2x8x1xf32> to vector<2x8x8xf32>
    %49 = vector.broadcast %47 : vector<1x8x8xf32> to vector<2x8x8xf32>
    %50 = arith.mulf %48, %49 : vector<2x8x8xf32>
    %cst_13 = arith.constant dense<0.000000e+00> : vector<2x8xf32>
    %51 = vector.multi_reduction <add>, %50, %cst_13 [1] : vector<2x8x8xf32> to vector<2x8xf32>
    %52 = arith.addf %45, %51 : vector<2x8xf32>
    %53 = vector.broadcast %39 : vector<1x8xf32> to vector<2x8xf32>
    %54 = arith.addf %52, %53 : vector<2x8xf32>
    %c4 = arith.constant 4 : index
    %55 = memref.load %arg2[%c4] : memref<12xf32, #tpu.memory_space<smem>>
    %c5 = arith.constant 5 : index
    %56 = memref.load %arg2[%c5] : memref<12xf32, #tpu.memory_space<smem>>
    %c6 = arith.constant 6 : index
    %57 = memref.load %arg2[%c6] : memref<12xf32, #tpu.memory_space<smem>>
    %c7 = arith.constant 7 : index
    %58 = memref.load %arg2[%c7] : memref<12xf32, #tpu.memory_space<smem>>
    %59 = vector.shape_cast %54 : vector<2x8xf32> to vector<2x8x1xf32>
    %60 = vector.shape_cast %54 : vector<2x8xf32> to vector<2x1x8xf32>
    %61 = vector.broadcast %59 : vector<2x8x1xf32> to vector<2x8x8xf32>
    %62 = vector.broadcast %60 : vector<2x1x8xf32> to vector<2x8x8xf32>
    %63 = arith.mulf %61, %62 : vector<2x8x8xf32>
    %64 = vector.broadcast %55 : f32 to vector<2x8x8xf32>
    %65 = arith.mulf %64, %63 : vector<2x8x8xf32>
    %66 = vector.broadcast %56 : f32 to vector<2x8x1xf32>
    %67 = arith.mulf %66, %59 : vector<2x8x1xf32>
    %68 = vector.broadcast %67 : vector<2x8x1xf32> to vector<2x8x8xf32>
    %69 = arith.addf %65, %68 : vector<2x8x8xf32>
    %70 = vector.broadcast %57 : f32 to vector<2x1x8xf32>
    %71 = arith.mulf %70, %60 : vector<2x1x8xf32>
    %72 = vector.broadcast %71 : vector<2x1x8xf32> to vector<2x8x8xf32>
    %73 = arith.addf %69, %72 : vector<2x8x8xf32>
    %74 = vector.broadcast %58 : f32 to vector<2x8x8xf32>
    %75 = arith.addf %73, %74 : vector<2x8x8xf32>
    %76 = arith.mulf %75, %1 : vector<2x8x8xf32>
    %cst_14 = arith.constant dense<0xFF800000> : vector<2x8xf32>
    %77 = vector.multi_reduction <maximumf>, %76, %cst_14 [1] : vector<2x8x8xf32> to vector<2x8xf32>
    %78 = vector.shape_cast %77 : vector<2x8xf32> to vector<2x1x8xf32>
    %79 = vector.broadcast %78 : vector<2x1x8xf32> to vector<2x8x8xf32>
    %80 = arith.subf %76, %79 : vector<2x8x8xf32>
    %81 = math.exp %80 : vector<2x8x8xf32>
    %cst_15 = arith.constant dense<0.000000e+00> : vector<2x8xf32>
    %82 = vector.multi_reduction <add>, %81, %cst_15 [1] : vector<2x8x8xf32> to vector<2x8xf32>
    %83 = vector.shape_cast %82 : vector<2x8xf32> to vector<2x1x8xf32>
    %84 = vector.broadcast %83 : vector<2x1x8xf32> to vector<2x8x8xf32>
    %85 = arith.divf %81, %84 : vector<2x8x8xf32>
    %86 = vector.broadcast %60 : vector<2x1x8xf32> to vector<2x8x8xf32>
    %87 = arith.mulf %85, %86 : vector<2x8x8xf32>
    %cst_16 = arith.constant dense<0.000000e+00> : vector<2x8xf32>
    %88 = vector.multi_reduction <add>, %87, %cst_16 [2] : vector<2x8x8xf32> to vector<2x8xf32>
    %cst_17 = arith.constant dense<0.000000e+00> : vector<2x8xf32>
    %89 = vector.multi_reduction <add>, %85, %cst_17 [2] : vector<2x8x8xf32> to vector<2x8xf32>
    %c16 = arith.constant 16 : index
    %c0_18 = arith.constant 0 : index
    %90 = vector.load %arg3[%c16, %c0_18] : memref<152x128xf32, #tpu.memory_space<vmem>>, vector<8x8xf32>
    %c24 = arith.constant 24 : index
    %c0_19 = arith.constant 0 : index
    %91 = vector.load %arg3[%c24, %c0_19] : memref<152x128xf32, #tpu.memory_space<vmem>>, vector<8x8xf32>
    %c49 = arith.constant 49 : index
    %c0_20 = arith.constant 0 : index
    %92 = vector.load %arg3[%c49, %c0_20] : memref<152x128xf32, #tpu.memory_space<vmem>>, vector<1x8xf32>
    %93 = vector.shape_cast %88 : vector<2x8xf32> to vector<2x8x1xf32>
    %94 = vector.shape_cast %90 : vector<8x8xf32> to vector<1x8x8xf32>
    %95 = vector.broadcast %93 : vector<2x8x1xf32> to vector<2x8x8xf32>
    %96 = vector.broadcast %94 : vector<1x8x8xf32> to vector<2x8x8xf32>
    %97 = arith.mulf %95, %96 : vector<2x8x8xf32>
    %cst_21 = arith.constant dense<0.000000e+00> : vector<2x8xf32>
    %98 = vector.multi_reduction <add>, %97, %cst_21 [1] : vector<2x8x8xf32> to vector<2x8xf32>
    %99 = vector.shape_cast %89 : vector<2x8xf32> to vector<2x8x1xf32>
    %100 = vector.shape_cast %91 : vector<8x8xf32> to vector<1x8x8xf32>
    %101 = vector.broadcast %99 : vector<2x8x1xf32> to vector<2x8x8xf32>
    %102 = vector.broadcast %100 : vector<1x8x8xf32> to vector<2x8x8xf32>
    %103 = arith.mulf %101, %102 : vector<2x8x8xf32>
    %cst_22 = arith.constant dense<0.000000e+00> : vector<2x8xf32>
    %104 = vector.multi_reduction <add>, %103, %cst_22 [1] : vector<2x8x8xf32> to vector<2x8xf32>
    %105 = arith.addf %98, %104 : vector<2x8xf32>
    %106 = vector.broadcast %92 : vector<1x8xf32> to vector<2x8xf32>
    %107 = arith.addf %105, %106 : vector<2x8xf32>
    %c8_23 = arith.constant 8 : index
    %108 = memref.load %arg2[%c8_23] : memref<12xf32, #tpu.memory_space<smem>>
    %c9 = arith.constant 9 : index
    %109 = memref.load %arg2[%c9] : memref<12xf32, #tpu.memory_space<smem>>
    %c10 = arith.constant 10 : index
    %110 = memref.load %arg2[%c10] : memref<12xf32, #tpu.memory_space<smem>>
    %c11 = arith.constant 11 : index
    %111 = memref.load %arg2[%c11] : memref<12xf32, #tpu.memory_space<smem>>
    %112 = vector.shape_cast %107 : vector<2x8xf32> to vector<2x8x1xf32>
    %113 = vector.shape_cast %107 : vector<2x8xf32> to vector<2x1x8xf32>
    %114 = vector.broadcast %112 : vector<2x8x1xf32> to vector<2x8x8xf32>
    %115 = vector.broadcast %113 : vector<2x1x8xf32> to vector<2x8x8xf32>
    %116 = arith.mulf %114, %115 : vector<2x8x8xf32>
    %117 = vector.broadcast %108 : f32 to vector<2x8x8xf32>
    %118 = arith.mulf %117, %116 : vector<2x8x8xf32>
    %119 = vector.broadcast %109 : f32 to vector<2x8x1xf32>
    %120 = arith.mulf %119, %112 : vector<2x8x1xf32>
    %121 = vector.broadcast %120 : vector<2x8x1xf32> to vector<2x8x8xf32>
    %122 = arith.addf %118, %121 : vector<2x8x8xf32>
    %123 = vector.broadcast %110 : f32 to vector<2x1x8xf32>
    %124 = arith.mulf %123, %113 : vector<2x1x8xf32>
    %125 = vector.broadcast %124 : vector<2x1x8xf32> to vector<2x8x8xf32>
    %126 = arith.addf %122, %125 : vector<2x8x8xf32>
    %127 = vector.broadcast %111 : f32 to vector<2x8x8xf32>
    %128 = arith.addf %126, %127 : vector<2x8x8xf32>
    %129 = arith.mulf %128, %1 : vector<2x8x8xf32>
    %cst_24 = arith.constant dense<0xFF800000> : vector<2x8xf32>
    %130 = vector.multi_reduction <maximumf>, %129, %cst_24 [1] : vector<2x8x8xf32> to vector<2x8xf32>
    %131 = vector.shape_cast %130 : vector<2x8xf32> to vector<2x1x8xf32>
    %132 = vector.broadcast %131 : vector<2x1x8xf32> to vector<2x8x8xf32>
    %133 = arith.subf %129, %132 : vector<2x8x8xf32>
    %134 = math.exp %133 : vector<2x8x8xf32>
    %cst_25 = arith.constant dense<0.000000e+00> : vector<2x8xf32>
    %135 = vector.multi_reduction <add>, %134, %cst_25 [1] : vector<2x8x8xf32> to vector<2x8xf32>
    %136 = vector.shape_cast %135 : vector<2x8xf32> to vector<2x1x8xf32>
    %137 = vector.broadcast %136 : vector<2x1x8xf32> to vector<2x8x8xf32>
    %138 = arith.divf %134, %137 : vector<2x8x8xf32>
    %139 = vector.broadcast %113 : vector<2x1x8xf32> to vector<2x8x8xf32>
    %140 = arith.mulf %138, %139 : vector<2x8x8xf32>
    %cst_26 = arith.constant dense<0.000000e+00> : vector<2x8xf32>
    %141 = vector.multi_reduction <add>, %140, %cst_26 [2] : vector<2x8x8xf32> to vector<2x8xf32>
    %cst_27 = arith.constant dense<0.000000e+00> : vector<2x8xf32>
    %142 = vector.multi_reduction <add>, %138, %cst_27 [2] : vector<2x8x8xf32> to vector<2x8xf32>
    %c32 = arith.constant 32 : index
    %c0_28 = arith.constant 0 : index
    %143 = vector.load %arg3[%c32, %c0_28] : memref<152x128xf32, #tpu.memory_space<vmem>>, vector<8x8xf32>
    %c40 = arith.constant 40 : index
    %c0_29 = arith.constant 0 : index
    %144 = vector.load %arg3[%c40, %c0_29] : memref<152x128xf32, #tpu.memory_space<vmem>>, vector<8x8xf32>
    %c50 = arith.constant 50 : index
    %c0_30 = arith.constant 0 : index
    %145 = vector.load %arg3[%c50, %c0_30] : memref<152x128xf32, #tpu.memory_space<vmem>>, vector<1x8xf32>
    %146 = vector.shape_cast %141 : vector<2x8xf32> to vector<2x8x1xf32>
    %147 = vector.shape_cast %143 : vector<8x8xf32> to vector<1x8x8xf32>
    %148 = vector.broadcast %146 : vector<2x8x1xf32> to vector<2x8x8xf32>
    %149 = vector.broadcast %147 : vector<1x8x8xf32> to vector<2x8x8xf32>
    %150 = arith.mulf %148, %149 : vector<2x8x8xf32>
    %cst_31 = arith.constant dense<0.000000e+00> : vector<2x8xf32>
    %151 = vector.multi_reduction <add>, %150, %cst_31 [1] : vector<2x8x8xf32> to vector<2x8xf32>
    %152 = vector.shape_cast %142 : vector<2x8xf32> to vector<2x8x1xf32>
    %153 = vector.shape_cast %144 : vector<8x8xf32> to vector<1x8x8xf32>
    %154 = vector.broadcast %152 : vector<2x8x1xf32> to vector<2x8x8xf32>
    %155 = vector.broadcast %153 : vector<1x8x8xf32> to vector<2x8x8xf32>
    %156 = arith.mulf %154, %155 : vector<2x8x8xf32>
    %cst_32 = arith.constant dense<0.000000e+00> : vector<2x8xf32>
    %157 = vector.multi_reduction <add>, %156, %cst_32 [1] : vector<2x8x8xf32> to vector<2x8xf32>
    %158 = arith.addf %151, %157 : vector<2x8xf32>
    %159 = vector.broadcast %145 : vector<1x8xf32> to vector<2x8xf32>
    %160 = arith.addf %158, %159 : vector<2x8xf32>
    %c56 = arith.constant 56 : index
    %c0_33 = arith.constant 0 : index
    %161 = vector.load %arg3[%c56, %c0_33] : memref<152x128xf32, #tpu.memory_space<vmem>>, vector<8x32xf32>
    %c64 = arith.constant 64 : index
    %c0_34 = arith.constant 0 : index
    %162 = vector.load %arg3[%c64, %c0_34] : memref<152x128xf32, #tpu.memory_space<vmem>>, vector<1x32xf32>
    %163 = vector.shape_cast %160 : vector<2x8xf32> to vector<2x8x1xf32>
    %164 = vector.shape_cast %161 : vector<8x32xf32> to vector<1x8x32xf32>
    %165 = vector.broadcast %163 : vector<2x8x1xf32> to vector<2x8x32xf32>
    %166 = vector.broadcast %164 : vector<1x8x32xf32> to vector<2x8x32xf32>
    %167 = arith.mulf %165, %166 : vector<2x8x32xf32>
    %cst_35 = arith.constant dense<0.000000e+00> : vector<2x32xf32>
    %168 = vector.multi_reduction <add>, %167, %cst_35 [1] : vector<2x8x32xf32> to vector<2x32xf32>
    %169 = vector.broadcast %162 : vector<1x32xf32> to vector<2x32xf32>
    %170 = arith.addf %168, %169 : vector<2x32xf32>
    %cst_36 = arith.constant 0.000000e+00 : f32
    %171 = vector.broadcast %cst_36 : f32 to vector<2x32xf32>
    %172 = arith.maximumf %170, %171 : vector<2x32xf32>
    %c72 = arith.constant 72 : index
    %c0_37 = arith.constant 0 : index
    %173 = vector.load %arg3[%c72, %c0_37] : memref<152x128xf32, #tpu.memory_space<vmem>>, vector<32x32xf32>
    %c104 = arith.constant 104 : index
    %c0_38 = arith.constant 0 : index
    %174 = vector.load %arg3[%c104, %c0_38] : memref<152x128xf32, #tpu.memory_space<vmem>>, vector<1x32xf32>
    %175 = vector.shape_cast %172 : vector<2x32xf32> to vector<2x32x1xf32>
    %176 = vector.shape_cast %173 : vector<32x32xf32> to vector<1x32x32xf32>
    %177 = vector.broadcast %175 : vector<2x32x1xf32> to vector<2x32x32xf32>
    %178 = vector.broadcast %176 : vector<1x32x32xf32> to vector<2x32x32xf32>
    %179 = arith.mulf %177, %178 : vector<2x32x32xf32>
    %cst_39 = arith.constant dense<0.000000e+00> : vector<2x32xf32>
    %180 = vector.multi_reduction <add>, %179, %cst_39 [1] : vector<2x32x32xf32> to vector<2x32xf32>
    %181 = vector.broadcast %174 : vector<1x32xf32> to vector<2x32xf32>
    %182 = arith.addf %180, %181 : vector<2x32xf32>
    %cst_40 = arith.constant 0.000000e+00 : f32
    %183 = vector.broadcast %cst_40 : f32 to vector<2x32xf32>
    %184 = arith.maximumf %182, %183 : vector<2x32xf32>
    %c112 = arith.constant 112 : index
    %c0_41 = arith.constant 0 : index
    %185 = vector.load %arg3[%c112, %c0_41] : memref<152x128xf32, #tpu.memory_space<vmem>>, vector<32x8xf32>
    %c144 = arith.constant 144 : index
    %c0_42 = arith.constant 0 : index
    %186 = vector.load %arg3[%c144, %c0_42] : memref<152x128xf32, #tpu.memory_space<vmem>>, vector<1x8xf32>
    %187 = vector.shape_cast %184 : vector<2x32xf32> to vector<2x32x1xf32>
    %188 = vector.shape_cast %185 : vector<32x8xf32> to vector<1x32x8xf32>
    %189 = vector.broadcast %187 : vector<2x32x1xf32> to vector<2x32x8xf32>
    %190 = vector.broadcast %188 : vector<1x32x8xf32> to vector<2x32x8xf32>
    %191 = arith.mulf %189, %190 : vector<2x32x8xf32>
    %cst_43 = arith.constant dense<0.000000e+00> : vector<2x8xf32>
    %192 = vector.multi_reduction <add>, %191, %cst_43 [1] : vector<2x32x8xf32> to vector<2x8xf32>
    %193 = vector.broadcast %186 : vector<1x8xf32> to vector<2x8xf32>
    %194 = arith.addf %192, %193 : vector<2x8xf32>
    %195 = tpu.iota {dimensions = array<i32: 1>} : vector<2x8xi32>
    %196 = math.tanh %194 : vector<2x8xf32>
    %cst_44 = arith.constant 1.000000e+00 : f32
    %197 = vector.broadcast %cst_44 : f32 to vector<2x8xf32>
    %198 = arith.addf %196, %197 : vector<2x8xf32>
    %cst_45 = arith.constant 3.500000e+00 : f32
    %199 = vector.broadcast %cst_45 : f32 to vector<2x8xf32>
    %200 = arith.mulf %199, %198 : vector<2x8xf32>
    %cst_46 = arith.constant -5.000000e+00 : f32
    %201 = vector.broadcast %cst_46 : f32 to vector<2x8xf32>
    %202 = arith.addf %201, %200 : vector<2x8xf32>
    %c4_i32 = arith.constant 4 : i32
    %203 = vector.broadcast %c4_i32 : i32 to vector<2x8xi32>
    %204 = arith.cmpi sge, %195, %203 : vector<2x8xi32>
    %205 = arith.select %204, %202, %194 : vector<2x8xi1>, vector<2x8xf32>
    %c0_47 = arith.constant 0 : index
    %c0_48 = arith.constant 0 : index
    %206 = vector.load %arg4[%c0_47, %c0_48] : memref<2x8xf32, #tpu.memory_space<vmem>>, vector<2x8xf32>
    tpu.vector_store %arg4[%c0_47, %c0_48], %205 {strides = array<i32>} : memref<2x8xf32, #tpu.memory_space<vmem>>, vector<2x8xf32>,
    return
  }
}

</mosaic_0001>

<llo_original>
// kernel: tpu_custom_call.1
$region0: #{tpu_custom_call.1}
  #allocation0 [shape = 'u32[]', space=smem, size = 0x4, offset = 0x4, fixed_abs, tag = 'smem constant byte address 0x4 - core index']
  #allocation1 [shape = 'u32[144,128]{1,0:T(1,128)}', space=vmem, size = 0x12000, scoped, tag = 'internal scratch']
  %s0 = inlined_call_operand.hbm [shape: f32[2,8], index: 0, kind: input, shape index: {}]
  %s1 = inlined_call_operand.hbm [shape: f32[2,8,8], index: 1, kind: input, shape index: {}]
  %s2 = inlined_call_operand.vmem [shape: f32[12], index: 2, kind: input, shape index: {}]
  %s3 = inlined_call_operand.hbm [shape: f32[152,128], index: 3, kind: input, shape index: {}]
  %s4 = inlined_call_operand.hbm [shape: f32[2,8], index: 4, kind: output, shape index: {}]
  %s5 = sld [smem:[#allocation0]]
  $region42: #{tpu_custom_call.1} parent=0
    _
  %s7 = ssub.s32 1, %s5
  %s8 = scalar_select 0, %s7, %s5
  $region1: #{tpu_custom_call.1} parent=0
    #allocation2 [shape = 'u8[1024]{0}', space=vmem, size = 0x400, scoped, tag = 'input window, operand 0, single buffered']
    #allocation3 [shape = 's32[1]{0}', space=sflag, size = 0x4, scoped, tag = 'scoped memory for tpu_custom_call.1']
    #allocation4 [shape = 's32[1]{0}', space=sflag, size = 0x4, scoped, tag = 'scoped memory for tpu_custom_call.1']
    #allocation5 [shape = 's32[1]{0}', space=sflag, size = 0x4, scoped, tag = 'scoped memory for tpu_custom_call.1']
    #allocation6 [shape = 'u8[8192]{0}', space=vmem, size = 0x2000, scoped, tag = 'input window, operand 1, single buffered']
    #allocation7 [shape = 's32[1]{0}', space=sflag, size = 0x4, scoped, tag = 'scoped memory for tpu_custom_call.1']
    #allocation8 [shape = 'u8[512]{0}', space=smem, size = 0x200, scoped, tag = 'input window, operand 2, single buffered']
    #allocation9 [shape = 'u8[77824]{0}', space=vmem, size = 0x13000, scoped, tag = 'input window, operand 3, single buffered']
    #allocation10 [shape = 'u8[1024]{0}', space=vmem, size = 0x400, scoped, tag = 'output window, operand 0, single buffered']
    %9 = vsyncpa [#allocation3], 0
    %10 = vsyncpa [#allocation7], 0
    %11 = vsyncpa [#allocation5], 0
    %12 = vsyncpa [#allocation4], 0
    // Predicated region
    $region2: #{tpu_custom_call.1} parent=1 // pred_check
      _
    $region3: #{tpu_custom_call.1} parent=1 // pred_check_branch
      %14 = sbr.rel (0) target = $region5
    $region4: #{tpu_custom_call.1} parent=1 // pred_region
      %s16 = ssub.s32 32, 32
      %17 = vsyncadd [#allocation3], %s16
      %s19 = sshll.u32 [#allocation2], 4
      %s20 = int_to_ptr.vmem [resolvable:$true] %s19
      %22 = dma.hbm_to_vmem [thread:$0]  %s0, 32, %s20, [#allocation3]
    $region5: #{tpu_custom_call.1} parent=1 // pred_fallthru
      _
    // Predicated region
    $region6: #{tpu_custom_call.1} parent=1 // pred_check
      _
    $region7: #{tpu_custom_call.1} parent=1 // pred_check_branch
      %24 = sbr.rel (0) target = $region9
    $region8: #{tpu_custom_call.1} parent=1 // pred_region
      %s26 = ssub.s32 256, 256
      %27 = vsyncadd [#allocation7], %s26
      %s28 = sshll.u32 [#allocation6], 4
      %s29 = int_to_ptr.vmem [resolvable:$true] %s28
      %34 = dma.hbm_to_vmem [thread:$0]  %s1, 256, %s29, [#allocation7], 128, 128, 8
    $region9: #{tpu_custom_call.1} parent=1 // pred_fallthru
      _
    // Predicated region
    $region10: #{tpu_custom_call.1} parent=1 // pred_check
      _
    $region11: #{tpu_custom_call.1} parent=1 // pred_check_branch
      %36 = sbr.rel (0) target = $region13
    $region12: #{tpu_custom_call.1} parent=1 // pred_region
      %s38 = ssub.s32 16, 16
      %39 = vsyncadd [#allocation5], %s38
      %s41 = sshll.u32 %s2, 4
      %s42 = int_to_ptr.vmem [resolvable:$true] %s41
      %44 = dma.vmem_to_smem %s42, 16, [#allocation8], [#allocation5]
    $region13: #{tpu_custom_call.1} parent=1 // pred_fallthru
      _
    // Predicated region
    $region14: #{tpu_custom_call.1} parent=1 // pred_check
      _
    $region15: #{tpu_custom_call.1} parent=1 // pred_check_branch
      %46 = sbr.rel (0) target = $region17
    $region16: #{tpu_custom_call.1} parent=1 // pred_region
      %s48 = ssub.s32 2432, 2432
      %49 = vsyncadd [#allocation7], %s48
      %s50 = sshll.u32 [#allocation9], 4
      %s51 = int_to_ptr.vmem [resolvable:$true] %s50
      %56 = dma.hbm_to_vmem [thread:$0]  %s3, 2432, %s51, [#allocation7], 128, 128, 8
    $region17: #{tpu_custom_call.1} parent=1 // pred_fallthru
      _
    // Predicated region
    $region18: #{tpu_custom_call.1} parent=1 // pred_check
      _
    $region19: #{tpu_custom_call.1} parent=1 // pred_check_branch
      %58 = sbr.rel (0) target = $region21
    $region20: #{tpu_custom_call.1} parent=1 // pred_region
      %59 = dma.done [#allocation3], 32
    $region21: #{tpu_custom_call.1} parent=1 // pred_fallthru
      _
    // Predicated region
    $region22: #{tpu_custom_call.1} parent=1 // pred_check
      _
    $region23: #{tpu_custom_call.1} parent=1 // pred_check_branch
      %61 = sbr.rel (0) target = $region25
    $region24: #{tpu_custom_call.1} parent=1 // pred_region
      %62 = dma.done [#allocation7], 256
    $region25: #{tpu_custom_call.1} parent=1 // pred_fallthru
      _
    // Predicated region
    $region26: #{tpu_custom_call.1} parent=1 // pred_check
      _
    $region27: #{tpu_custom_call.1} parent=1 // pred_check_branch
      %64 = sbr.rel (0) target = $region29
    $region28: #{tpu_custom_call.1} parent=1 // pred_region
      %65 = dma.done [#allocation5], 16
    $region29: #{tpu_custom_call.1} parent=1 // pred_fallthru
      _
    // Predicated region
    $region30: #{tpu_custom_call.1} parent=1 // pred_check
      _
    $region31: #{tpu_custom_call.1} parent=1 // pred_check_branch
      %67 = sbr.rel (0) target = $region33
    $region32: #{tpu_custom_call.1} parent=1 // pred_region
      %68 = dma.done [#allocation7], 2432
    $region33: #{tpu_custom_call.1} parent=1 // pred_fallthru
      _
    %69 = sfence
    %v70 = vld [vmem:[#allocation2] sm:$0x3]
    %v71 = vld [vmem:[#allocation6] sm:$0xff]
    %v72 = vld [vmem:[#allocation6 + $0x8] sm:$0xff]
    %s73 = sld [smem:[#allocation8]]
    %s74 = sld [smem:[#allocation8 + $0x1]]
    %s75 = sld [smem:[#allocation8 + $0x2]]
    %s76 = sld [smem:[#allocation8 + $0x3]]
    %v77 = vlaneseq
    %v78 = vshrl.u32 %v77, 7
    %v79 = vsub.s32 0, %v78
    %v80 = vrot.slane %v70, %v79
    %82 = vbcast.lane.b32.xlu0 %v80, 256
    %v83 = vpop.permute.xlu0 %82
    %v84 = vlaneseq
    %v85 = vshrl.u32 %v84, 7
    %v86 = vsub.s32 1, %v85
    %v87 = vrot.slane %v70, %v86
    %89 = vbcast.lane.b32.xlu0 %v87, 256
    %v90 = vpop.permute.xlu0 %89
    %v93 = vunpack.c.l.s4 1966171168
    %v94 = vunpack.c.0.s8 %v93
    %v95 = vlaneseq
    %v96 = vshrl.u32 %v95, 7
    %v97 = vsub.s32 %v94, %v96
    %v98 = vrot.slane %v70, %v97
    %v99 = vcombine.high %v98, %v98
    %v101 = vunpack.c.l.s4 1966171168
    %v102 = vunpack.c.0.s8 %v101
    %v103 = vlaneseq
    %v104 = vshrl.u32 %v103, 7
    %v105 = vsub.s32 %v102, %v104
    %v106 = vrot.slane %v98, %v105
    %v108 = vunpack.c.l.s4 1966171168
    %v109 = vunpack.c.0.s8 %v108
    %v110 = vlaneseq
    %v111 = vshrl.u32 %v110, 7
    %v112 = vsub.s32 %v109, %v111
    %v113 = vrot.slane %v99, %v112
    %v116 = vlaneseq
    %v117 = vshrl.u32 %v116, 7
    %v118 = vsub.s32 0, %v117
    %v119 = vrot.slane %v106, %v118
    %v120 = vlaneseq
    %v121 = vshrl.u32 %v120, 7
    %v122 = vsub.s32 0, %v121
    %v123 = vrot.slane %v113, %v122
    %v126 = vmul.f32 %v83, %v119
    %v127 = vmul.f32 %v90, %v123
    %v128 = vstv %s73
    %v129 = vmul.f32 %v128, %v126
    %v130 = vmul.f32 %v128, %v127
    %v131 = vstv %s74
    %v132 = vmul.f32 %v131, %v83
    %v133 = vmul.f32 %v131, %v90
    %v134 = vadd.f32 %v129, %v132
    %v135 = vadd.f32 %v130, %v133
    %v136 = vstv %s75
    %v137 = vmul.f32 %v136, %v106
    %v138 = vmul.f32 %v136, %v113
    %v141 = vlaneseq
    %v142 = vshrl.u32 %v141, 7
    %v143 = vsub.s32 0, %v142
    %v144 = vrot.slane %v137, %v143
    %v145 = vlaneseq
    %v146 = vshrl.u32 %v145, 7
    %v147 = vsub.s32 0, %v146
    %v148 = vrot.slane %v138, %v147
    %v151 = vadd.f32 %v134, %v144
    %v152 = vadd.f32 %v135, %v148
    %v153 = vstv %s76
    %v154 = vadd.f32 %v151, %v153
    %v155 = vadd.f32 %v152, %v153
    %v156 = vmul.f32 %v154, %v71
    %v157 = vmul.f32 %v155, %v72
    %vm158 = vcmask 64512
    %v159 = vsel %vm158, %v156, -inf
    %v160 = vrot.slane %v159, 4
    %v161 = vmax.f32 %v159, %v160
    %v162 = vrot.slane %v161, 2
    %v163 = vmax.f32 %v161, %v162
    %v164 = vrot.slane %v163, 1
    %v165 = vmax.f32 %v163, %v164
    %v166 = vsel %vm158, %v157, -inf
    %v167 = vrot.slane %v166, 4
    %v168 = vmax.f32 %v166, %v167
    %v169 = vrot.slane %v168, 2
    %v170 = vmax.f32 %v168, %v169
    %v171 = vrot.slane %v170, 1
    %v172 = vmax.f32 %v170, %v171
    %v173 = vsub.f32 %v156, %v165
    %v174 = vsub.f32 %v157, %v172
    %v175 = vmul.f32 %v173, 1.442695
    %v176 = vpow.pop %v175
    %v177 = vmul.f32 %v174, 1.442695
    %v178 = vpow.pop %v177
    %v179 = vsel %vm158, %v176, 0.0
    %v180 = vrot.slane %v179, 4
    %v181 = vadd.f32 %v179, %v180
    %v182 = vrot.slane %v181, 2
    %v183 = vadd.f32 %v181, %v182
    %v184 = vrot.slane %v183, 1
    %v185 = vadd.f32 %v183, %v184
    %v186 = vsel %vm158, %v178, 0.0
    %v187 = vrot.slane %v186, 4
    %v188 = vadd.f32 %v186, %v187
    %v189 = vrot.slane %v188, 2
    %v190 = vadd.f32 %v188, %v189
    %v191 = vrot.slane %v190, 1
    %v192 = vadd.f32 %v190, %v191
    %v193 = vrcp.pop %v185
    %v194 = vmul.f32 %v176, %v193
    %v195 = vrcp.pop %v192
    %v196 = vmul.f32 %v178, %v195
    %v197 = vmul.f32 %v194, %v119
    %v198 = vmul.f32 %v196, %v123
    %v199 = vsel %vm158, %v197, 0.0
    %200 = vadd.xlane.f32.xlu0 %v199
    %v201 = vpop.xlane.xlu0 %200
    %v202 = vsel %vm158, %v198, 0.0
    %203 = vadd.xlane.f32.xlu0 %v202
    %v204 = vpop.xlane.xlu0 %203
    %v205 = vsel %vm158, %v194, 0.0
    %206 = vadd.xlane.f32.xlu0 %v205
    %v207 = vpop.xlane.xlu0 %206
    %v208 = vsel %vm158, %v196, 0.0
    %209 = vadd.xlane.f32.xlu0 %v208
    %v210 = vpop.xlane.xlu0 %209
    %v211 = vld [vmem:[#allocation9] sm:$0xff]
    %v212 = vld [vmem:[#allocation9 + $0x8] sm:$0xff]
    %v213 = vld [vmem:[#allocation9 + $0x30] sm:$0x1]
    %v214 = vmul.f32 %v201, %v211
    %v215 = vmul.f32 %v204, %v211
    %v216 = vsel %vm158, %v214, 0.0
    %v217 = vrot.slane %v216, 4
    %v218 = vadd.f32 %v216, %v217
    %v219 = vrot.slane %v218, 2
    %v220 = vadd.f32 %v218, %v219
    %v221 = vrot.slane %v220, 1
    %v222 = vadd.f32 %v220, %v221
    %v223 = vsel %vm158, %v215, 0.0
    %v224 = vrot.slane %v223, 4
    %v225 = vadd.f32 %v223, %v224
    %v226 = vrot.slane %v225, 2
    %v227 = vadd.f32 %v225, %v226
    %v228 = vrot.slane %v227, 1
    %v229 = vadd.f32 %v227, %v228
    %v230 = vmul.f32 %v207, %v212
    %v231 = vmul.f32 %v210, %v212
    %v232 = vsel %vm158, %v230, 0.0
    %v233 = vrot.slane %v232, 4
    %v234 = vadd.f32 %v232, %v233
    %v235 = vrot.slane %v234, 2
    %v236 = vadd.f32 %v234, %v235
    %v237 = vrot.slane %v236, 1
    %v238 = vadd.f32 %v236, %v237
    %v239 = vsel %vm158, %v231, 0.0
    %v240 = vrot.slane %v239, 4
    %v241 = vadd.f32 %v239, %v240
    %v242 = vrot.slane %v241, 2
    %v243 = vadd.f32 %v241, %v242
    %v244 = vrot.slane %v243, 1
    %v245 = vadd.f32 %v243, %v244
    %v246 = vadd.f32 %v222, %v238
    %v247 = vadd.f32 %v229, %v245
    %v248 = vlaneseq
    %v249 = vshrl.u32 %v248, 7
    %v250 = vsub.s32 0, %v249
    %v251 = vrot.slane %v213, %v250
    %v252 = vadd.f32 %v246, %v251
    %v253 = vadd.f32 %v247, %v251
    %s254 = sld [smem:[#allocation8 + $0x4]]
    %s255 = sld [smem:[#allocation8 + $0x5]]
    %s256 = sld [smem:[#allocation8 + $0x6]]
    %s257 = sld [smem:[#allocation8 + $0x7]]
    %v258 = vlaneseq
    %v259 = vshrl.u32 %v258, 7
    %v260 = vsub.s32 0, %v259
    %v261 = vrot.slane %v252, %v260
    %263 = vbcast.lane.b32.xlu0 %v261, 256
    %v264 = vpop.permute.xlu0 %263
    %v265 = vlaneseq
    %v266 = vshrl.u32 %v265, 7
    %v267 = vsub.s32 0, %v266
    %v268 = vrot.slane %v253, %v267
    %270 = vbcast.lane.b32.xlu0 %v268, 256
    %v271 = vpop.permute.xlu0 %270
    %v272 = vmul.f32 %v264, %v261
    %v273 = vmul.f32 %v271, %v268
    %v274 = vstv %s254
    %v275 = vmul.f32 %v274, %v272
    %v276 = vmul.f32 %v274, %v273
    %v277 = vstv %s255
    %v278 = vmul.f32 %v277, %v264
    %v279 = vmul.f32 %v277, %v271
    %v280 = vadd.f32 %v275, %v278
    %v281 = vadd.f32 %v276, %v279
    %v282 = vstv %s256
    %v283 = vmul.f32 %v282, %v252
    %v284 = vmul.f32 %v282, %v253
    %v285 = vlaneseq
    %v286 = vshrl.u32 %v285, 7
    %v287 = vsub.s32 0, %v286
    %v288 = vrot.slane %v283, %v287
    %v289 = vlaneseq
    %v290 = vshrl.u32 %v289, 7
    %v291 = vsub.s32 0, %v290
    %v292 = vrot.slane %v284, %v291
    %v293 = vadd.f32 %v280, %v288
    %v294 = vadd.f32 %v281, %v292
    %v295 = vstv %s257
    %v296 = vadd.f32 %v293, %v295
    %v297 = vadd.f32 %v294, %v295
    %v298 = vmul.f32 %v296, %v71
    %v299 = vmul.f32 %v297, %v72
    %v300 = vsel %vm158, %v298, -inf
    %v301 = vrot.slane %v300, 4
    %v302 = vmax.f32 %v300, %v301
    %v303 = vrot.slane %v302, 2
    %v304 = vmax.f32 %v302, %v303
    %v305 = vrot.slane %v304, 1
    %v306 = vmax.f32 %v304, %v305
    %v307 = vsel %vm158, %v299, -inf
    %v308 = vrot.slane %v307, 4
    %v309 = vmax.f32 %v307, %v308
    %v310 = vrot.slane %v309, 2
    %v311 = vmax.f32 %v309, %v310
    %v312 = vrot.slane %v311, 1
    %v313 = vmax.f32 %v311, %v312
    %v314 = vsub.f32 %v298, %v306
    %v315 = vsub.f32 %v299, %v313
    %v316 = vmul.f32 %v314, 1.442695
    %v317 = vpow.pop %v316
    %v318 = vmul.f32 %v315, 1.442695
    %v319 = vpow.pop %v318
    %v320 = vsel %vm158, %v317, 0.0
    %v321 = vrot.slane %v320, 4
    %v322 = vadd.f32 %v320, %v321
    %v323 = vrot.slane %v322, 2
    %v324 = vadd.f32 %v322, %v323
    %v325 = vrot.slane %v324, 1
    %v326 = vadd.f32 %v324, %v325
    %v327 = vsel %vm158, %v319, 0.0
    %v328 = vrot.slane %v327, 4
    %v329 = vadd.f32 %v327, %v328
    %v330 = vrot.slane %v329, 2
    %v331 = vadd.f32 %v329, %v330
    %v332 = vrot.slane %v331, 1
    %v333 = vadd.f32 %v331, %v332
    %v334 = vrcp.pop %v326
    %v335 = vmul.f32 %v317, %v334
    %v336 = vrcp.pop %v333
    %v337 = vmul.f32 %v319, %v336
    %v338 = vmul.f32 %v335, %v261
    %v339 = vmul.f32 %v337, %v268
    %v340 = vsel %vm158, %v338, 0.0
    %341 = vadd.xlane.f32.xlu0 %v340
    %v342 = vpop.xlane.xlu0 %341
    %v343 = vsel %vm158, %v339, 0.0
    %344 = vadd.xlane.f32.xlu0 %v343
    %v345 = vpop.xlane.xlu0 %344
    %v346 = vsel %vm158, %v335, 0.0
    %347 = vadd.xlane.f32.xlu0 %v346
    %v348 = vpop.xlane.xlu0 %347
    %v349 = vsel %vm158, %v337, 0.0
    %350 = vadd.xlane.f32.xlu0 %v349
    %v351 = vpop.xlane.xlu0 %350
    %v352 = vld [vmem:[#allocation9 + $0x10] sm:$0xff]
    %v353 = vld [vmem:[#allocation9 + $0x18] sm:$0xff]
    %v354 = vld [vmem:[#allocation9 + $0x31] sm:$0x1]
    %v355 = vmul.f32 %v342, %v352
    %v356 = vmul.f32 %v345, %v352
    %v357 = vsel %vm158, %v355, 0.0
    %v358 = vrot.slane %v357, 4
    %v359 = vadd.f32 %v357, %v358
    %v360 = vrot.slane %v359, 2
    %v361 = vadd.f32 %v359, %v360
    %v362 = vrot.slane %v361, 1
    %v363 = vadd.f32 %v361, %v362
    %v364 = vsel %vm158, %v356, 0.0
    %v365 = vrot.slane %v364, 4
    %v366 = vadd.f32 %v364, %v365
    %v367 = vrot.slane %v366, 2
    %v368 = vadd.f32 %v366, %v367
    %v369 = vrot.slane %v368, 1
    %v370 = vadd.f32 %v368, %v369
    %v371 = vmul.f32 %v348, %v353
    %v372 = vmul.f32 %v351, %v353
    %v373 = vsel %vm158, %v371, 0.0
    %v374 = vrot.slane %v373, 4
    %v375 = vadd.f32 %v373, %v374
    %v376 = vrot.slane %v375, 2
    %v377 = vadd.f32 %v375, %v376
    %v378 = vrot.slane %v377, 1
    %v379 = vadd.f32 %v377, %v378
    %v380 = vsel %vm158, %v372, 0.0
    %v381 = vrot.slane %v380, 4
    %v382 = vadd.f32 %v380, %v381
    %v383 = vrot.slane %v382, 2
    %v384 = vadd.f32 %v382, %v383
    %v385 = vrot.slane %v384, 1
    %v386 = vadd.f32 %v384, %v385
    %v387 = vadd.f32 %v363, %v379
    %v388 = vadd.f32 %v370, %v386
    %v389 = vlaneseq
    %v390 = vshrl.u32 %v389, 7
    %v391 = vsub.s32 0, %v390
    %v392 = vrot.slane %v354, %v391
    %v393 = vadd.f32 %v387, %v392
    %v394 = vadd.f32 %v388, %v392
    %s395 = sld [smem:[#allocation8 + $0x8]]
    %s396 = sld [smem:[#allocation8 + $0x9]]
    %s397 = sld [smem:[#allocation8 + $0xa]]
    %s398 = sld [smem:[#allocation8 + $0xb]]
    %v399 = vlaneseq
    %v400 = vshrl.u32 %v399, 7
    %v401 = vsub.s32 0, %v400
    %v402 = vrot.slane %v393, %v401
    %404 = vbcast.lane.b32.xlu0 %v402, 256
    %v405 = vpop.permute.xlu0 %404
    %v406 = vlaneseq
    %v407 = vshrl.u32 %v406, 7
    %v408 = vsub.s32 0, %v407
    %v409 = vrot.slane %v394, %v408
    %411 = vbcast.lane.b32.xlu0 %v409, 256
    %v412 = vpop.permute.xlu0 %411
    %v413 = vmul.f32 %v405, %v402
    %v414 = vmul.f32 %v412, %v409
    %v415 = vstv %s395
    %v416 = vmul.f32 %v415, %v413
    %v417 = vmul.f32 %v415, %v414
    %v418 = vstv %s396
    %v419 = vmul.f32 %v418, %v405
    %v420 = vmul.f32 %v418, %v412
    %v421 = vadd.f32 %v416, %v419
    %v422 = vadd.f32 %v417, %v420
    %v423 = vstv %s397
    %v424 = vmul.f32 %v423, %v393
    %v425 = vmul.f32 %v423, %v394
    %v426 = vlaneseq
    %v427 = vshrl.u32 %v426, 7
    %v428 = vsub.s32 0, %v427
    %v429 = vrot.slane %v424, %v428
    %v430 = vlaneseq
    %v431 = vshrl.u32 %v430, 7
    %v432 = vsub.s32 0, %v431
    %v433 = vrot.slane %v425, %v432
    %v434 = vadd.f32 %v421, %v429
    %v435 = vadd.f32 %v422, %v433
    %v436 = vstv %s398
    %v437 = vadd.f32 %v434, %v436
    %v438 = vadd.f32 %v435, %v436
    %v439 = vmul.f32 %v437, %v71
    %v440 = vmul.f32 %v438, %v72
    %v441 = vsel %vm158, %v439, -inf
    %v442 = vrot.slane %v441, 4
    %v443 = vmax.f32 %v441, %v442
    %v444 = vrot.slane %v443, 2
    %v445 = vmax.f32 %v443, %v444
    %v446 = vrot.slane %v445, 1
    %v447 = vmax.f32 %v445, %v446
    %v448 = vsel %vm158, %v440, -inf
    %v449 = vrot.slane %v448, 4
    %v450 = vmax.f32 %v448, %v449
    %v451 = vrot.slane %v450, 2
    %v452 = vmax.f32 %v450, %v451
    %v453 = vrot.slane %v452, 1
    %v454 = vmax.f32 %v452, %v453
    %v455 = vsub.f32 %v439, %v447
    %v456 = vsub.f32 %v440, %v454
    %v457 = vmul.f32 %v455, 1.442695
    %v458 = vpow.pop %v457
    %v459 = vmul.f32 %v456, 1.442695
    %v460 = vpow.pop %v459
    %v461 = vsel %vm158, %v458, 0.0
    %v462 = vrot.slane %v461, 4
    %v463 = vadd.f32 %v461, %v462
    %v464 = vrot.slane %v463, 2
    %v465 = vadd.f32 %v463, %v464
    %v466 = vrot.slane %v465, 1
    %v467 = vadd.f32 %v465, %v466
    %v468 = vsel %vm158, %v460, 0.0
    %v469 = vrot.slane %v468, 4
    %v470 = vadd.f32 %v468, %v469
    %v471 = vrot.slane %v470, 2
    %v472 = vadd.f32 %v470, %v471
    %v473 = vrot.slane %v472, 1
    %v474 = vadd.f32 %v472, %v473
    %v475 = vrcp.pop %v467
    %v476 = vmul.f32 %v458, %v475
    %v477 = vrcp.pop %v474
    %v478 = vmul.f32 %v460, %v477
    %v479 = vmul.f32 %v476, %v402
    %v480 = vmul.f32 %v478, %v409
    %v481 = vsel %vm158, %v479, 0.0
    %482 = vadd.xlane.f32.xlu0 %v481
    %v483 = vpop.xlane.xlu0 %482
    %v484 = vsel %vm158, %v480, 0.0
    %485 = vadd.xlane.f32.xlu0 %v484
    %v486 = vpop.xlane.xlu0 %485
    %v487 = vsel %vm158, %v476, 0.0
    %488 = vadd.xlane.f32.xlu0 %v487
    %v489 = vpop.xlane.xlu0 %488
    %v490 = vsel %vm158, %v478, 0.0
    %491 = vadd.xlane.f32.xlu0 %v490
    %v492 = vpop.xlane.xlu0 %491
    %v493 = vld [vmem:[#allocation9 + $0x20] sm:$0xff]
    %v494 = vld [vmem:[#allocation9 + $0x28] sm:$0xff]
    %v495 = vld [vmem:[#allocation9 + $0x32] sm:$0x1]
    %v496 = vmul.f32 %v483, %v493
    %v497 = vmul.f32 %v486, %v493
    %v498 = vsel %vm158, %v496, 0.0
    %v499 = vrot.slane %v498, 4
    %v500 = vadd.f32 %v498, %v499
    %v501 = vrot.slane %v500, 2
    %v502 = vadd.f32 %v500, %v501
    %v503 = vrot.slane %v502, 1
    %v504 = vadd.f32 %v502, %v503
    %v505 = vsel %vm158, %v497, 0.0
    %v506 = vrot.slane %v505, 4
    %v507 = vadd.f32 %v505, %v506
    %v508 = vrot.slane %v507, 2
    %v509 = vadd.f32 %v507, %v508
    %v510 = vrot.slane %v509, 1
    %v511 = vadd.f32 %v509, %v510
    %v512 = vmul.f32 %v489, %v494
    %v513 = vmul.f32 %v492, %v494
    %v514 = vsel %vm158, %v512, 0.0
    %v515 = vrot.slane %v514, 4
    %v516 = vadd.f32 %v514, %v515
    %v517 = vrot.slane %v516, 2
    %v518 = vadd.f32 %v516, %v517
    %v519 = vrot.slane %v518, 1
    %v520 = vadd.f32 %v518, %v519
    %v521 = vsel %vm158, %v513, 0.0
    %v522 = vrot.slane %v521, 4
    %v523 = vadd.f32 %v521, %v522
    %v524 = vrot.slane %v523, 2
    %v525 = vadd.f32 %v523, %v524
    %v526 = vrot.slane %v525, 1
    %v527 = vadd.f32 %v525, %v526
    %v528 = vadd.f32 %v504, %v520
    %v529 = vadd.f32 %v511, %v527
    %v530 = vlaneseq
    %v531 = vshrl.u32 %v530, 7
    %v532 = vsub.s32 0, %v531
    %v533 = vrot.slane %v495, %v532
    %v534 = vadd.f32 %v528, %v533
    %v535 = vadd.f32 %v529, %v533
    %v536 = vld [vmem:[#allocation9 + $0x38] sm:$0xff]
    %v537 = vld [vmem:[#allocation9 + $0x40] sm:$0x1]
    %v538 = vlaneseq
    %v539 = vshrl.u32 %v538, 7
    %v540 = vsub.s32 0, %v539
    %v541 = vrot.slane %v534, %v540
    %543 = vbcast.lane.b32.xlu0 %v541, 256
    %v544 = vpop.permute.xlu0 %543
    %v545 = vlaneseq
    %v546 = vshrl.u32 %v545, 7
    %v547 = vsub.s32 0, %v546
    %v548 = vrot.slane %v535, %v547
    %550 = vbcast.lane.b32.xlu0 %v548, 256
    %v551 = vpop.permute.xlu0 %550
    %v552 = vmul.f32 %v544, %v536
    %v553 = vmul.f32 %v551, %v536
    %vm554 = vcmask 261120
    %v555 = vsel %vm554, %v552, 0.0
    %v556 = vrot.slane %v555, 4
    %v557 = vadd.f32 %v555, %v556
    %v558 = vrot.slane %v557, 2
    %v559 = vadd.f32 %v557, %v558
    %v560 = vrot.slane %v559, 1
    %v561 = vadd.f32 %v559, %v560
    %v562 = vsel %vm554, %v553, 0.0
    %v563 = vrot.slane %v562, 4
    %v564 = vadd.f32 %v562, %v563
    %v565 = vrot.slane %v564, 2
    %v566 = vadd.f32 %v564, %v565
    %v567 = vrot.slane %v566, 1
    %v568 = vadd.f32 %v566, %v567
    %v569 = vlaneseq
    %v570 = vshrl.u32 %v569, 7
    %v571 = vsub.s32 0, %v570
    %v572 = vrot.slane %v537, %v571
    %v573 = vadd.f32 %v561, %v572
    %v574 = vadd.f32 %v568, %v572
    %v575 = vmax.f32 %v573, 0.0
    %v576 = vmax.f32 %v574, 0.0
    %v577 = vld [vmem:[#allocation9 + $0x48] sm:$0xff]
    %v578 = vld [vmem:[#allocation9 + $0x50] sm:$0xff]
    %v579 = vld [vmem:[#allocation9 + $0x58] sm:$0xff]
    %v580 = vld [vmem:[#allocation9 + $0x60] sm:$0xff]
    %v581 = vld [vmem:[#allocation9 + $0x68] sm:$0x1]
    %v582 = vlaneseq
    %v583 = vshrl.u32 %v582, 7
    %v584 = vsub.s32 0, %v583
    %v585 = vrot.slane %v575, %v584
    %587 = vbcast.lane.b32.xlu0 %v585, 256
    %v588 = vpop.permute.xlu0 %587
    %s590 = sor.u32 256, 8
    %591 = vbcast.lane.b32.xlu0 %v585, %s590
    %v592 = vpop.permute.xlu0 %591
    %s594 = sor.u32 256, 16
    %595 = vbcast.lane.b32.xlu0 %v585, %s594
    %v596 = vpop.permute.xlu0 %595
    %s598 = sor.u32 256, 24
    %599 = vbcast.lane.b32.xlu0 %v585, %s598
    %v600 = vpop.permute.xlu0 %599
    %v601 = vlaneseq
    %v602 = vshrl.u32 %v601, 7
    %v603 = vsub.s32 0, %v602
    %v604 = vrot.slane %v576, %v603
    %606 = vbcast.lane.b32.xlu0 %v604, 256
    %v607 = vpop.permute.xlu0 %606
    %s609 = sor.u32 256, 8
    %610 = vbcast.lane.b32.xlu0 %v604, %s609
    %v611 = vpop.permute.xlu0 %610
    %s613 = sor.u32 256, 16
    %614 = vbcast.lane.b32.xlu0 %v604, %s613
    %v615 = vpop.permute.xlu0 %614
    %s617 = sor.u32 256, 24
    %618 = vbcast.lane.b32.xlu0 %v604, %s617
    %v619 = vpop.permute.xlu0 %618
    %v620 = vmul.f32 %v588, %v577
    %v621 = vmul.f32 %v592, %v578
    %v622 = vmul.f32 %v596, %v579
    %v623 = vmul.f32 %v600, %v580
    %v624 = vmul.f32 %v607, %v577
    %v625 = vmul.f32 %v611, %v578
    %v626 = vmul.f32 %v615, %v579
    %v627 = vmul.f32 %v619, %v580
    %v628 = vsel %vm554, %v620, 0.0
    %v629 = vsel %vm554, %v621, 0.0
    %v630 = vadd.f32 %v628, %v629
    %v631 = vsel %vm554, %v622, 0.0
    %v632 = vadd.f32 %v630, %v631
    %v633 = vsel %vm554, %v623, 0.0
    %v634 = vadd.f32 %v632, %v633
    %v635 = vrot.slane %v634, 4
    %v636 = vadd.f32 %v634, %v635
    %v637 = vrot.slane %v636, 2
    %v638 = vadd.f32 %v636, %v637
    %v639 = vrot.slane %v638, 1
    %v640 = vadd.f32 %v638, %v639
    %v641 = vsel %vm554, %v624, 0.0
    %v642 = vsel %vm554, %v625, 0.0
    %v643 = vadd.f32 %v641, %v642
    %v644 = vsel %vm554, %v626, 0.0
    %v645 = vadd.f32 %v643, %v644
    %v646 = vsel %vm554, %v627, 0.0
    %v647 = vadd.f32 %v645, %v646
    %v648 = vrot.slane %v647, 4
    %v649 = vadd.f32 %v647, %v648
    %v650 = vrot.slane %v649, 2
    %v651 = vadd.f32 %v649, %v650
    %v652 = vrot.slane %v651, 1
    %v653 = vadd.f32 %v651, %v652
    %v654 = vlaneseq
    %v655 = vshrl.u32 %v654, 7
    %v656 = vsub.s32 0, %v655
    %v657 = vrot.slane %v581, %v656
    %v658 = vadd.f32 %v640, %v657
    %v659 = vadd.f32 %v653, %v657
    %v660 = vmax.f32 %v658, 0.0
    %v661 = vmax.f32 %v659, 0.0
    %v662 = vld [vmem:[#allocation9 + $0x70] sm:$0xff]
    %v663 = vld [vmem:[#allocation9 + $0x78] sm:$0xff]
    %v664 = vld [vmem:[#allocation9 + $0x80] sm:$0xff]
    %v665 = vld [vmem:[#allocation9 + $0x88] sm:$0xff]
    %v666 = vld [vmem:[#allocation9 + $0x90] sm:$0x1]
    %v667 = vlaneseq
    %v668 = vshrl.u32 %v667, 7
    %v669 = vsub.s32 0, %v668
    %v670 = vrot.slane %v660, %v669
    %672 = vbcast.lane.b32.xlu0 %v670, 256
    %v673 = vpop.permute.xlu0 %672
    %s675 = sor.u32 256, 8
    %676 = vbcast.lane.b32.xlu0 %v670, %s675
    %v677 = vpop.permute.xlu0 %676
    %s679 = sor.u32 256, 16
    %680 = vbcast.lane.b32.xlu0 %v670, %s679
    %v681 = vpop.permute.xlu0 %680
    %s683 = sor.u32 256, 24
    %684 = vbcast.lane.b32.xlu0 %v670, %s683
    %v685 = vpop.permute.xlu0 %684
    %v686 = vlaneseq
    %v687 = vshrl.u32 %v686, 7
    %v688 = vsub.s32 0, %v687
    %v689 = vrot.slane %v661, %v688
    %691 = vbcast.lane.b32.xlu0 %v689, 256
    %v692 = vpop.permute.xlu0 %691
    %s694 = sor.u32 256, 8
    %695 = vbcast.lane.b32.xlu0 %v689, %s694
    %v696 = vpop.permute.xlu0 %695
    %s698 = sor.u32 256, 16
    %699 = vbcast.lane.b32.xlu0 %v689, %s698
    %v700 = vpop.permute.xlu0 %699
    %s702 = sor.u32 256, 24
    %703 = vbcast.lane.b32.xlu0 %v689, %s702
    %v704 = vpop.permute.xlu0 %703
    %v705 = vmul.f32 %v673, %v662
    %v706 = vmul.f32 %v677, %v663
    %v707 = vmul.f32 %v681, %v664
    %v708 = vmul.f32 %v685, %v665
    %v709 = vmul.f32 %v692, %v662
    %v710 = vmul.f32 %v696, %v663
    %v711 = vmul.f32 %v700, %v664
    %v712 = vmul.f32 %v704, %v665
    %v713 = vsel %vm158, %v705, 0.0
    %v714 = vsel %vm158, %v706, 0.0
    %v715 = vadd.f32 %v713, %v714
    %v716 = vsel %vm158, %v707, 0.0
    %v717 = vadd.f32 %v715, %v716
    %v718 = vsel %vm158, %v708, 0.0
    %v719 = vadd.f32 %v717, %v718
    %v720 = vrot.slane %v719, 4
    %v721 = vadd.f32 %v719, %v720
    %v722 = vrot.slane %v721, 2
    %v723 = vadd.f32 %v721, %v722
    %v724 = vrot.slane %v723, 1
    %v725 = vadd.f32 %v723, %v724
    %v726 = vsel %vm158, %v709, 0.0
    %v727 = vsel %vm158, %v710, 0.0
    %v728 = vadd.f32 %v726, %v727
    %v729 = vsel %vm158, %v711, 0.0
    %v730 = vadd.f32 %v728, %v729
    %v731 = vsel %vm158, %v712, 0.0
    %v732 = vadd.f32 %v730, %v731
    %v733 = vrot.slane %v732, 4
    %v734 = vadd.f32 %v732, %v733
    %v735 = vrot.slane %v734, 2
    %v736 = vadd.f32 %v734, %v735
    %v737 = vrot.slane %v736, 1
    %v738 = vadd.f32 %v736, %v737
    %v739 = vlaneseq
    %v740 = vshrl.u32 %v739, 7
    %v741 = vsub.s32 0, %v740
    %v742 = vrot.slane %v666, %v741
    %v743 = vadd.f32 %v725, %v742
    %v744 = vadd.f32 %v738, %v742
    %v745 = vlaneseq
    %v746 = vand.u32 %v745, 127
    %v747 = vtanh.pop %v743
    %v748 = vtanh.pop %v744
    %v749 = vadd.f32 %v747, 1.0
    %v750 = vadd.f32 %v748, 1.0
    %v751 = vmul.f32 %v749, 3.5
    %v752 = vmul.f32 %v750, 3.5
    %v753 = vadd.f32 %v751, -5.0
    %v754 = vadd.f32 %v752, -5.0
    %vm755 = vcmp.ge.s32.totalorder %v746, 4
    %v758 = vrot.slane %v754, 7
    %vm759 = vcmask 1041409
    %v760 = vsel %vm759, %v758, %v753
    %v764 = vrot.slane %v744, 7
    %v765 = vsel %vm759, %v764, %v743
    %v767 = vsel %vm755, %v760, %v765
    %vm768 = vcmask 58368
    %769 = vst.msk [vmem:[#allocation10] sm:$0x3] %vm768, %v767
    // Predicated region
    $region34: #{tpu_custom_call.1} parent=1 // pred_check
      _
    $region35: #{tpu_custom_call.1} parent=1 // pred_check_branch
      %771 = sbr.rel (0) target = $region37
    $region36: #{tpu_custom_call.1} parent=1 // pred_region
      %s773 = ssub.s32 32, 32
      %774 = vsyncadd [#allocation4], %s773
      %s776 = sshll.u32 [#allocation10], 4
      %s777 = int_to_ptr.vmem [resolvable:$true] %s776
      %779 = dma.vmem_to_hbm [thread:$0]  %s777, 32, %s4, [#allocation4]
    $region37: #{tpu_custom_call.1} parent=1 // pred_fallthru
      _
    // Predicated region
    $region38: #{tpu_custom_call.1} parent=1 // pred_check
      _
    $region39: #{tpu_custom_call.1} parent=1 // pred_check_branch
      %781 = sbr.rel (0) target = $region41
    $region40: #{tpu_custom_call.1} parent=1 // pred_region
      %782 = dma.done [#allocation4], 32
    $region41: #{tpu_custom_call.1} parent=1 // pred_fallthru
      _
    %783 = vsyncpa [#allocation3], 1
    %784 = vsyncpa [#allocation7], 1
    %785 = vsyncpa [#allocation4], 1
    %786 = vsyncpa [#allocation5], 1

</llo_original>
